<compile_context>
chip_gen: v7x
topology: tpu7x:2x2x1
jax: 0.10.0
libtpu: 0.0.40
codegen_flags: <defaults>
</compile_context>

<pallas_src>
import jax
import jax.numpy as jnp
from jax.experimental import pallas as pl
from jax.experimental.pallas import tpu as pltpu


def _convblock_kernel(xp_ref, wbig_ref, sb_ref, out_ref):
    # xp_ref   : (NB, Hp, Wp*Cin)       bf16 padded input rows (channels in lanes)
    # wbig_ref : (KH, Wp*Cin, Wo*Cout)  bf16 Toeplitz-expanded conv weights
    # sb_ref   : (2, Wo*Cout)           f32  row0 = BN scale, row1 = BN bias (lane-tiled)
    # out_ref  : (NB, Ho, Wo*Cout)      f32  lane-dense output slab
    NB, Ho, WoC = out_ref.shape
    KH = wbig_ref.shape[0]

    scale = sb_ref[0]          # (Wo*Cout,)  hoisted out of the loops
    bias = sb_ref[1]

    for n in range(NB):                      # static unroll (NB is small)
        acc = jnp.zeros((Ho, WoC), dtype=jnp.float32)
        for kh in range(KH):                 # static unroll over kernel rows
            # Sublane row-slice at full lane width (cheap, no strided copy);
            # the kw shift lives inside wbig_ref[kh].
            acc = acc + jnp.dot(
                xp_ref[n, kh:kh + Ho, :],    # (Ho, Wp*Cin)  bf16
                wbig_ref[kh],                # (Wp*Cin, Wo*Cout) bf16
                preferred_element_type=jnp.float32,
            )
        y = acc * scale + bias               # fused BatchNorm (inference), f32
        out_ref[n] = jnp.maximum(y, 0.0)     # ReLU; full 128-lane unmasked store


def conv_block_pallas(x_nchw, w_oihw, gamma, beta, run_mean, run_var,
                      *, padding=1, bn_eps=1e-5, batch_block=None):
    """ConvBlock forward. x_nchw: (N, Cin, H, W) -> (N, Cout, H_out, W_out)."""
    N, Cin, H, W = x_nchw.shape
    Cout, _, KH, KW = w_oihw.shape
    Hp, Wp = H + 2 * padding, W + 2 * padding
    Ho, Wo = Hp - KH + 1, Wp - KW + 1        # stride = 1, dilation = 1

    # --- activation glue (single fused pass under jit): NCHW -> padded NHWC, bf16,
    #     channels flattened into the lane axis.
    x_nhwc = jnp.transpose(x_nchw, (0, 2, 3, 1)).astype(jnp.bfloat16)
    xp = jnp.pad(x_nhwc, ((0, 0), (padding, padding), (padding, padding), (0, 0)))
    xp = xp.reshape(N, Hp, Wp * Cin)

    # --- Toeplitz-expanded weights: w_big[kh, (w+kw)*Cin+ci, w*Cout+co] = W[kh,kw,ci,co]
    w_hwio = jnp.transpose(w_oihw, (2, 3, 1, 0)).astype(jnp.bfloat16)   # (KH,KW,Cin,Cout)
    w_flat = w_hwio.reshape(KH, KW * Cin, Cout)
    cols = [
        jnp.pad(w_flat, ((0, 0), (w * Cin, (Wo - 1 - w) * Cin), (0, 0)))
        for w in range(Wo)
    ]
    w_big = jnp.concatenate(cols, axis=-1)                              # (KH, Wp*Cin, Wo*Cout)

    # --- fold BatchNorm2d (inference / running stats) into scale & bias, pre-tiled
    #     to the lane-dense (w*Cout + co) layout, packed into one (2, Wo*Cout) buffer.
    scale = (gamma / jnp.sqrt(run_var + bn_eps)).astype(jnp.float32)
    bias = (beta - run_mean * scale).astype(jnp.float32)
    sb = jnp.stack([jnp.tile(scale, Wo), jnp.tile(bias, Wo)], axis=0)   # (2, Wo*Cout)

    if batch_block is None:
        batch_block = N        # collapse the batch grid (best on single-TC v5e/v6e);
                               # use batch_block=1 on v7x to shard N across its 2 TCs.
    grid = (N // batch_block,)

    out_lanes = pl.pallas_call(
        _convblock_kernel,
        out_shape=jax.ShapeDtypeStruct((N, Ho, Wo * Cout), jnp.float32),
        grid_spec=pltpu.PrefetchScalarGridSpec(
            num_scalar_prefetch=0,
            grid=grid,
            in_specs=[
                pl.BlockSpec((batch_block, Hp, Wp * Cin), lambda b: (b, 0, 0)),
                pl.BlockSpec((KH, Wp * Cin, Wo * Cout), lambda b: (0, 0, 0)),
                pl.BlockSpec((2, Wo * Cout), lambda b: (0, 0)),
            ],
            out_specs=pl.BlockSpec((batch_block, Ho, Wo * Cout), lambda b: (b, 0, 0)),
        ),
        compiler_params=pltpu.CompilerParams(
            dimension_semantics=("parallel",),
        ),
    )(xp, w_big, sb)

    # (N, Ho, Wo*Cout) -> (N, Ho, Wo, Cout) is a free reshape; transpose back to NCHW
    # to match the PyTorch module's output convention.
    return jnp.transpose(out_lanes.reshape(N, Ho, Wo, Cout), (0, 3, 1, 2))


def _reference(x_nchw, w_oihw, gamma, beta, run_mean, run_var,
               *, padding=1, bn_eps=1e-5):
    y = jax.lax.conv_general_dilated(
        x_nchw, w_oihw, window_strides=(1, 1),
        padding=[(padding, padding), (padding, padding)],
        dimension_numbers=("NCHW", "OIHW", "NCHW"))
    scale = gamma / jnp.sqrt(run_var + bn_eps)
    bias = beta - run_mean * scale
    y = y * scale[None, :, None, None] + bias[None, :, None, None]
    return jnp.maximum(y, 0.0)


if __name__ == "__main__":
    # ConvBlock(in_channels=4, out_channels=8, kernel_size=3, stride=1,
    #           padding=1, bias=False, use_bn=True, activation='relu')
    N, Cin, H, W = 2, 4, 16, 16
    Cout, KH, KW = 8, 3, 3

    key = jax.random.PRNGKey(0)
    k_x, k_w, k_g, k_b, k_m, k_v = jax.random.split(key, 6)

    x = jax.random.normal(k_x, (N, Cin, H, W), dtype=jnp.float32)
    w = jax.random.normal(k_w, (Cout, Cin, KH, KW), dtype=jnp.float32) * 0.1
    gamma = jax.random.uniform(k_g, (Cout,), minval=0.5, maxval=1.5)
    beta = jax.random.normal(k_b, (Cout,), dtype=jnp.float32) * 0.1
    run_mean = jax.random.normal(k_m, (Cout,), dtype=jnp.float32) * 0.1
    run_var = jax.random.uniform(k_v, (Cout,), minval=0.5, maxval=1.5)

    conv_fn = jax.jit(conv_block_pallas)
    out = conv_fn(x, w, gamma, beta, run_mean, run_var)
    out = jax.block_until_ready(out)

    ref = _reference(x, w, gamma, beta, run_mean, run_var)
    assert out.shape == (N, Cout, H, W), out.shape
    max_err = float(jnp.max(jnp.abs(out - ref)))
    # bf16 matmul operands (f32 accumulation) vs f32 reference -> loosened tolerance.
    assert jnp.allclose(out, ref, atol=7e-2, rtol=5e-2), max_err

    print("KERNEL_OK")
</pallas_src>

<mosaic_0001>
module attributes {stable_mosaic.version = 11 : i64} {
  func.func @_convblock_kernel(%arg0: i32, %arg1: memref<2x18x72xbf16, #tpu.memory_space<vmem>>, %arg2: memref<3x72x128xbf16, #tpu.memory_space<vmem>>, %arg3: memref<2x128xf32, #tpu.memory_space<vmem>>, %arg4: memref<2x16x128xf32, #tpu.memory_space<vmem>>) attributes {dimension_semantics = [#tpu.dimension_semantics<parallel>], iteration_bounds = array<i64: 1>, scalar_prefetch = 0 : i64, scratch_operands = 0 : i64, tpu.core_type = #tpu.core_type<tc>, window_params = [{transform_indices = @transform_0, window_bounds = array<i64: 2, 18, 72>}, {pipeline_mode = #tpu.pipeline_mode<synchronous>, transform_indices = @transform_1, window_bounds = array<i64: 3, 72, 128>}, {pipeline_mode = #tpu.pipeline_mode<synchronous>, transform_indices = @transform_2, window_bounds = array<i64: 2, 128>}, {transform_indices = @transform_3, window_bounds = array<i64: 2, 16, 128>}]} {
    %c0 = arith.constant 0 : index
    %c0_0 = arith.constant 0 : index
    %0 = vector.load %arg3[%c0, %c0_0] : memref<2x128xf32, #tpu.memory_space<vmem>>, vector<1x128xf32>
    %1 = vector.shape_cast %0 : vector<1x128xf32> to vector<128xf32>
    %c1 = arith.constant 1 : index
    %c0_1 = arith.constant 0 : index
    %2 = vector.load %arg3[%c1, %c0_1] : memref<2x128xf32, #tpu.memory_space<vmem>>, vector<1x128xf32>
    %3 = vector.shape_cast %2 : vector<1x128xf32> to vector<128xf32>
    %cst = arith.constant 0.000000e+00 : f32
    %4 = vector.broadcast %cst : f32 to vector<16x128xf32>
    %c0_2 = arith.constant 0 : index
    %c0_3 = arith.constant 0 : index
    %c0_4 = arith.constant 0 : index
    %5 = vector.load %arg1[%c0_2, %c0_3, %c0_4] : memref<2x18x72xbf16, #tpu.memory_space<vmem>>, vector<1x16x72xbf16>
    %6 = vector.shape_cast %5 : vector<1x16x72xbf16> to vector<16x72xbf16>
    %c0_5 = arith.constant 0 : index
    %c0_6 = arith.constant 0 : index
    %c0_7 = arith.constant 0 : index
    %7 = vector.load %arg2[%c0_5, %c0_6, %c0_7] : memref<3x72x128xbf16, #tpu.memory_space<vmem>>, vector<1x72x128xbf16>
    %8 = vector.shape_cast %7 : vector<1x72x128xbf16> to vector<72x128xbf16>
    %cst_8 = arith.constant dense<0.000000e+00> : vector<16x128xf32>
    %9 = tpu.matmul %6, %8, %cst_8 {dimension_numbers = #tpu.dot_dimension_numbers<[1], [0], [0], [1], [0, 0, 1, 1], [], []>} : vector<16x72xbf16>, vector<72x128xbf16>, vector<16x128xf32> -> vector<16x128xf32>
    %10 = arith.addf %4, %9 : vector<16x128xf32>
    %c0_9 = arith.constant 0 : index
    %c1_10 = arith.constant 1 : index
    %c0_11 = arith.constant 0 : index
    %11 = vector.load %arg1[%c0_9, %c1_10, %c0_11] : memref<2x18x72xbf16, #tpu.memory_space<vmem>>, vector<1x16x72xbf16>
    %12 = vector.shape_cast %11 : vector<1x16x72xbf16> to vector<16x72xbf16>
    %c1_12 = arith.constant 1 : index
    %c0_13 = arith.constant 0 : index
    %c0_14 = arith.constant 0 : index
    %13 = vector.load %arg2[%c1_12, %c0_13, %c0_14] : memref<3x72x128xbf16, #tpu.memory_space<vmem>>, vector<1x72x128xbf16>
    %14 = vector.shape_cast %13 : vector<1x72x128xbf16> to vector<72x128xbf16>
    %cst_15 = arith.constant dense<0.000000e+00> : vector<16x128xf32>
    %15 = tpu.matmul %12, %14, %cst_15 {dimension_numbers = #tpu.dot_dimension_numbers<[1], [0], [0], [1], [0, 0, 1, 1], [], []>} : vector<16x72xbf16>, vector<72x128xbf16>, vector<16x128xf32> -> vector<16x128xf32>
    %16 = arith.addf %10, %15 : vector<16x128xf32>
    %c0_16 = arith.constant 0 : index
    %c2 = arith.constant 2 : index
    %c0_17 = arith.constant 0 : index
    %17 = vector.load %arg1[%c0_16, %c2, %c0_17] : memref<2x18x72xbf16, #tpu.memory_space<vmem>>, vector<1x16x72xbf16>
    %18 = vector.shape_cast %17 : vector<1x16x72xbf16> to vector<16x72xbf16>
    %c2_18 = arith.constant 2 : index
    %c0_19 = arith.constant 0 : index
    %c0_20 = arith.constant 0 : index
    %19 = vector.load %arg2[%c2_18, %c0_19, %c0_20] : memref<3x72x128xbf16, #tpu.memory_space<vmem>>, vector<1x72x128xbf16>
    %20 = vector.shape_cast %19 : vector<1x72x128xbf16> to vector<72x128xbf16>
    %cst_21 = arith.constant dense<0.000000e+00> : vector<16x128xf32>
    %21 = tpu.matmul %18, %20, %cst_21 {dimension_numbers = #tpu.dot_dimension_numbers<[1], [0], [0], [1], [0, 0, 1, 1], [], []>} : vector<16x72xbf16>, vector<72x128xbf16>, vector<16x128xf32> -> vector<16x128xf32>
    %22 = arith.addf %16, %21 : vector<16x128xf32>
    %23 = vector.shape_cast %1 : vector<128xf32> to vector<1x128xf32>
    %24 = vector.broadcast %23 : vector<1x128xf32> to vector<16x128xf32>
    %25 = arith.mulf %22, %24 : vector<16x128xf32>
    %26 = vector.shape_cast %3 : vector<128xf32> to vector<1x128xf32>
    %27 = vector.broadcast %26 : vector<1x128xf32> to vector<16x128xf32>
    %28 = arith.addf %25, %27 : vector<16x128xf32>
    %cst_22 = arith.constant 0.000000e+00 : f32
    %29 = vector.broadcast %cst_22 : f32 to vector<16x128xf32>
    %30 = arith.maximumf %28, %29 : vector<16x128xf32>
    %c0_23 = arith.constant 0 : index
    %c0_24 = arith.constant 0 : index
    %c0_25 = arith.constant 0 : index
    %31 = vector.load %arg4[%c0_23, %c0_24, %c0_25] : memref<2x16x128xf32, #tpu.memory_space<vmem>>, vector<1x16x128xf32>
    %32 = vector.shape_cast %31 : vector<1x16x128xf32> to vector<16x128xf32>
    %33 = vector.shape_cast %30 : vector<16x128xf32> to vector<1x16x128xf32>
    tpu.vector_store %arg4[%c0_23, %c0_24, %c0_25], %33 {strides = array<i32>} : memref<2x16x128xf32, #tpu.memory_space<vmem>>, vector<1x16x128xf32>,
    %cst_26 = arith.constant 0.000000e+00 : f32
    %34 = vector.broadcast %cst_26 : f32 to vector<16x128xf32>
    %c1_27 = arith.constant 1 : index
    %c0_28 = arith.constant 0 : index
    %c0_29 = arith.constant 0 : index
    %35 = vector.load %arg1[%c1_27, %c0_28, %c0_29] : memref<2x18x72xbf16, #tpu.memory_space<vmem>>, vector<1x16x72xbf16>
    %36 = vector.shape_cast %35 : vector<1x16x72xbf16> to vector<16x72xbf16>
    %c0_30 = arith.constant 0 : index
    %c0_31 = arith.constant 0 : index
    %c0_32 = arith.constant 0 : index
    %37 = vector.load %arg2[%c0_30, %c0_31, %c0_32] : memref<3x72x128xbf16, #tpu.memory_space<vmem>>, vector<1x72x128xbf16>
    %38 = vector.shape_cast %37 : vector<1x72x128xbf16> to vector<72x128xbf16>
    %cst_33 = arith.constant dense<0.000000e+00> : vector<16x128xf32>
    %39 = tpu.matmul %36, %38, %cst_33 {dimension_numbers = #tpu.dot_dimension_numbers<[1], [0], [0], [1], [0, 0, 1, 1], [], []>} : vector<16x72xbf16>, vector<72x128xbf16>, vector<16x128xf32> -> vector<16x128xf32>
    %40 = arith.addf %34, %39 : vector<16x128xf32>
    %c1_34 = arith.constant 1 : index
    %c1_35 = arith.constant 1 : index
    %c0_36 = arith.constant 0 : index
    %41 = vector.load %arg1[%c1_34, %c1_35, %c0_36] : memref<2x18x72xbf16, #tpu.memory_space<vmem>>, vector<1x16x72xbf16>
    %42 = vector.shape_cast %41 : vector<1x16x72xbf16> to vector<16x72xbf16>
    %c1_37 = arith.constant 1 : index
    %c0_38 = arith.constant 0 : index
    %c0_39 = arith.constant 0 : index
    %43 = vector.load %arg2[%c1_37, %c0_38, %c0_39] : memref<3x72x128xbf16, #tpu.memory_space<vmem>>, vector<1x72x128xbf16>
    %44 = vector.shape_cast %43 : vector<1x72x128xbf16> to vector<72x128xbf16>
    %cst_40 = arith.constant dense<0.000000e+00> : vector<16x128xf32>
    %45 = tpu.matmul %42, %44, %cst_40 {dimension_numbers = #tpu.dot_dimension_numbers<[1], [0], [0], [1], [0, 0, 1, 1], [], []>} : vector<16x72xbf16>, vector<72x128xbf16>, vector<16x128xf32> -> vector<16x128xf32>
    %46 = arith.addf %40, %45 : vector<16x128xf32>
    %c1_41 = arith.constant 1 : index
    %c2_42 = arith.constant 2 : index
    %c0_43 = arith.constant 0 : index
    %47 = vector.load %arg1[%c1_41, %c2_42, %c0_43] : memref<2x18x72xbf16, #tpu.memory_space<vmem>>, vector<1x16x72xbf16>
    %48 = vector.shape_cast %47 : vector<1x16x72xbf16> to vector<16x72xbf16>
    %c2_44 = arith.constant 2 : index
    %c0_45 = arith.constant 0 : index
    %c0_46 = arith.constant 0 : index
    %49 = vector.load %arg2[%c2_44, %c0_45, %c0_46] : memref<3x72x128xbf16, #tpu.memory_space<vmem>>, vector<1x72x128xbf16>
    %50 = vector.shape_cast %49 : vector<1x72x128xbf16> to vector<72x128xbf16>
    %cst_47 = arith.constant dense<0.000000e+00> : vector<16x128xf32>
    %51 = tpu.matmul %48, %50, %cst_47 {dimension_numbers = #tpu.dot_dimension_numbers<[1], [0], [0], [1], [0, 0, 1, 1], [], []>} : vector<16x72xbf16>, vector<72x128xbf16>, vector<16x128xf32> -> vector<16x128xf32>
    %52 = arith.addf %46, %51 : vector<16x128xf32>
    %53 = vector.shape_cast %1 : vector<128xf32> to vector<1x128xf32>
    %54 = vector.broadcast %53 : vector<1x128xf32> to vector<16x128xf32>
    %55 = arith.mulf %52, %54 : vector<16x128xf32>
    %56 = vector.shape_cast %3 : vector<128xf32> to vector<1x128xf32>
    %57 = vector.broadcast %56 : vector<1x128xf32> to vector<16x128xf32>
    %58 = arith.addf %55, %57 : vector<16x128xf32>
    %cst_48 = arith.constant 0.000000e+00 : f32
    %59 = vector.broadcast %cst_48 : f32 to vector<16x128xf32>
    %60 = arith.maximumf %58, %59 : vector<16x128xf32>
    %c1_49 = arith.constant 1 : index
    %c0_50 = arith.constant 0 : index
    %c0_51 = arith.constant 0 : index
    %61 = vector.load %arg4[%c1_49, %c0_50, %c0_51] : memref<2x16x128xf32, #tpu.memory_space<vmem>>, vector<1x16x128xf32>
    %62 = vector.shape_cast %61 : vector<1x16x128xf32> to vector<16x128xf32>
    %63 = vector.shape_cast %60 : vector<16x128xf32> to vector<1x16x128xf32>
    tpu.vector_store %arg4[%c1_49, %c0_50, %c0_51], %63 {strides = array<i32>} : memref<2x16x128xf32, #tpu.memory_space<vmem>>, vector<1x16x128xf32>,
    return
  }
  func.func @transform_0(%arg0: i32) -> (i32, i32, i32) {
    %c0_i32 = arith.constant 0 : i32
    %c0_i32_0 = arith.constant 0 : i32
    %c0_i32_1 = arith.constant 0 : i32
    return %arg0, %c0_i32, %c0_i32_0 : i32, i32, i32
  }
  func.func @transform_1(%arg0: i32) -> (i32, i32, i32) {
    %c0_i32 = arith.constant 0 : i32
    %c0_i32_0 = arith.constant 0 : i32
    %c0_i32_1 = arith.constant 0 : i32
    %c0_i32_2 = arith.constant 0 : i32
    return %c0_i32, %c0_i32_0, %c0_i32_1 : i32, i32, i32
  }
  func.func @transform_2(%arg0: i32) -> (i32, i32) {
    %c0_i32 = arith.constant 0 : i32
    %c0_i32_0 = arith.constant 0 : i32
    %c0_i32_1 = arith.constant 0 : i32
    return %c0_i32, %c0_i32_0 : i32, i32
  }
  func.func @transform_3(%arg0: i32) -> (i32, i32, i32) {
    %c0_i32 = arith.constant 0 : i32
    %c0_i32_0 = arith.constant 0 : i32
    %c0_i32_1 = arith.constant 0 : i32
    return %arg0, %c0_i32, %c0_i32_0 : i32, i32, i32
  }
}

</mosaic_0001>

<llo_original>
// kernel: tile.13
$region0: #{tile.13}
  #allocation0 [shape = 's32[1]{0}', space=sflag, size = 0x4, scoped, tag = 'scoped memory for tile.13']
  %s0 = inlined_call_operand.vmem [shape: f32[8], index: 0, kind: input, shape index: {}]
  %s1 = inlined_call_operand.vmem [shape: f32[16,8], index: 1, kind: output, shape index: {}]
  // Predicated region
  $region2: #{tile.13} parent=0 // pred_check
    _
  $region3: #{tile.13} parent=0 // pred_check_branch
    %3 = sbr.rel (0) target = $region5
  $region4: #{tile.13} parent=0 // pred_region
    _
  $region5: #{tile.13} parent=0 // pred_fallthru
    _
  %v4 = vld [vmem:[%s0] ss:$0 sm:$0xff]
  %5 = vst [vmem:[%s1] sm:$0xff] %v4
  %s6 = scalar_lea.vmem %s1, 8
  %7 = vst [vmem:[%s6] sm:$0xff] %v4

// kernel: tile.18
$region0: #{tile.18}
  %s0 = inlined_call_operand.vmem [shape: f32[16,8], index: 0, kind: input, shape index: {}]
  %s1 = inlined_call_operand.vmem [shape: f32[1,128], index: 1, kind: output, shape index: {}]
  $region1: #{tile.18} parent=0
    #allocation0 [shape = 'u8[4096]{0}', space=vmem, size = 0x1000, scoped, tag = 'scoped mem for output reshape']
    %v2 = vld [vmem:[%s0] sm:$0x1]
    %vm3 = vcmask 64512
    %4 = vst.msk [vmem:[#allocation0] sm:$0x1] %vm3, %v2
    %s5 = scalar_lea.vmem %s0, 15
    %v6 = vld [vmem:[%s5] sm:$0x1]
    %7 = vrot.lane.b32.xlu0 %v6, 120
    %v8 = vpop.permute.xlu0 %7
    %vm9 = vcmask 1048512
    %10 = vst.msk [vmem:[#allocation0] sm:$0x1] %vm9, %v8
    %s11 = scalar_lea.vmem %s0, 14
    %v12 = vld [vmem:[%s11] sm:$0x1]
    %13 = vrot.lane.b32.xlu0 %v12, 112
    %v14 = vpop.permute.xlu0 %13
    %vm15 = vcmask 982912
    %16 = vst.msk [vmem:[#allocation0] sm:$0x1] %vm15, %v14
    %s17 = scalar_lea.vmem %s0, 13
    %v18 = vld [vmem:[%s17] sm:$0x1]
    %19 = vrot.lane.b32.xlu0 %v18, 104
    %v20 = vpop.permute.xlu0 %19
    %vm21 = vcmask 917312
    %22 = vst.msk [vmem:[#allocation0] sm:$0x1] %vm21, %v20
    %s23 = scalar_lea.vmem %s0, 12
    %v24 = vld [vmem:[%s23] sm:$0x1]
    %25 = vrot.lane.b32.xlu0 %v24, 96
    %v26 = vpop.permute.xlu0 %25
    %vm27 = vcmask 851712
    %28 = vst.msk [vmem:[#allocation0] sm:$0x1] %vm27, %v26
    %s29 = scalar_lea.vmem %s0, 11
    %v30 = vld [vmem:[%s29] sm:$0x1]
    %31 = vrot.lane.b32.xlu0 %v30, 88
    %v32 = vpop.permute.xlu0 %31
    %vm33 = vcmask 786112
    %34 = vst.msk [vmem:[#allocation0] sm:$0x1] %vm33, %v32
    %s35 = scalar_lea.vmem %s0, 10
    %v36 = vld [vmem:[%s35] sm:$0x1]
    %37 = vrot.lane.b32.xlu0 %v36, 80
    %v38 = vpop.permute.xlu0 %37
    %vm39 = vcmask 720512
    %40 = vst.msk [vmem:[#allocation0] sm:$0x1] %vm39, %v38
    %s41 = scalar_lea.vmem %s0, 9
    %v42 = vld [vmem:[%s41] sm:$0x1]
    %43 = vrot.lane.b32.xlu0 %v42, 72
    %v44 = vpop.permute.xlu0 %43
    %vm45 = vcmask 654912
    %46 = vst.msk [vmem:[#allocation0] sm:$0x1] %vm45, %v44
    %s47 = scalar_lea.vmem %s0, 8
    %v48 = vld [vmem:[%s47] sm:$0x1]
    %49 = vrot.lane.b32.xlu0 %v48, 64
    %v50 = vpop.permute.xlu0 %49
    %vm51 = vcmask 589312
    %52 = vst.msk [vmem:[#allocation0] sm:$0x1] %vm51, %v50
    %s53 = scalar_lea.vmem %s0, 7
    %v54 = vld [vmem:[%s53] sm:$0x1]
    %55 = vrot.lane.b32.xlu0 %v54, 56
    %v56 = vpop.permute.xlu0 %55
    %vm57 = vcmask 523712
    %58 = vst.msk [vmem:[#allocation0] sm:$0x1] %vm57, %v56
    %s59 = scalar_lea.vmem %s0, 6
    %v60 = vld [vmem:[%s59] sm:$0x1]
    %61 = vrot.lane.b32.xlu0 %v60, 48
    %v62 = vpop.permute.xlu0 %61
    %vm63 = vcmask 458112
    %64 = vst.msk [vmem:[#allocation0] sm:$0x1] %vm63, %v62
    %s65 = scalar_lea.vmem %s0, 5
    %v66 = vld [vmem:[%s65] sm:$0x1]
    %67 = vrot.lane.b32.xlu0 %v66, 40
    %v68 = vpop.permute.xlu0 %67
    %vm69 = vcmask 392512
    %70 = vst.msk [vmem:[#allocation0] sm:$0x1] %vm69, %v68
    %s71 = scalar_lea.vmem %s0, 4
    %v72 = vld [vmem:[%s71] sm:$0x1]
    %73 = vrot.lane.b32.xlu0 %v72, 32
    %v74 = vpop.permute.xlu0 %73
    %vm75 = vcmask 326912
    %76 = vst.msk [vmem:[#allocation0] sm:$0x1] %vm75, %v74
    %s77 = scalar_lea.vmem %s0, 3
    %v78 = vld [vmem:[%s77] sm:$0x1]
    %79 = vrot.lane.b32.xlu0 %v78, 24
    %v80 = vpop.permute.xlu0 %79
    %vm81 = vcmask 261312
    %82 = vst.msk [vmem:[#allocation0] sm:$0x1] %vm81, %v80
    %s83 = scalar_lea.vmem %s0, 2
    %v84 = vld [vmem:[%s83] sm:$0x1]
    %85 = vrot.lane.b32.xlu0 %v84, 16
    %v86 = vpop.permute.xlu0 %85
    %vm87 = vcmask 195712
    %88 = vst.msk [vmem:[#allocation0] sm:$0x1] %vm87, %v86
    %s89 = scalar_lea.vmem %s0, 1
    %v90 = vld [vmem:[%s89] sm:$0x1]
    %91 = vrot.lane.b32.xlu0 %v90, 8
    %v92 = vpop.permute.xlu0 %91
    %vm93 = vcmask 130112
    %94 = vst.msk [vmem:[#allocation0] sm:$0x1] %vm93, %v92
    %s96 = sshllo.u32 0, 1
    %v98 = vld [vmem:[#allocation0] sm:%s96]
    %s99 = sshllo.u32 0, 1
    %100 = vst [vmem:[%s1] sm:%s99] %v98

// kernel: conv_block_pallas.1
$region0: #{conv_block_pallas.1}
  #allocation0 [shape = 'u32[]', space=smem, size = 0x4, offset = 0x4, fixed_abs, tag = 'smem constant byte address 0x4 - core index']
  #allocation1 [shape = 'u32[144,128]{1,0:T(1,128)}', space=vmem, size = 0x12000, scoped, tag = 'internal scratch']
  %s0 = inlined_call_operand.vmem [shape: bf16[2,18,72], index: 0, kind: input, shape index: {}]
  %s1 = inlined_call_operand.vmem [shape: bf16[3,72,128], index: 1, kind: input, shape index: {}]
  %s2 = inlined_call_operand.vmem [shape: f32[2,128], index: 2, kind: input, shape index: {}]
  %s3 = inlined_call_operand.vmem [shape: f32[2,16,128], index: 3, kind: output, shape index: {}]
  %s4 = sld [smem:[#allocation0]]
  $region22: #{conv_block_pallas.1} parent=0
    _
  %s6 = ssub.s32 1, %s4
  %s7 = scalar_select 0, %s6, %s4
  // Predicated region
  $region2: #{conv_block_pallas.1} parent=0 // pred_check
    _
  $region3: #{conv_block_pallas.1} parent=0 // pred_check_branch
    %9 = sbr.rel (0) target = $region5
  $region4: #{conv_block_pallas.1} parent=0 // pred_region
    _
  $region5: #{conv_block_pallas.1} parent=0 // pred_fallthru
    _
  // Predicated region
  $region6: #{conv_block_pallas.1} parent=0 // pred_check
    _
  $region7: #{conv_block_pallas.1} parent=0 // pred_check_branch
    %11 = sbr.rel (0) target = $region9
  $region8: #{conv_block_pallas.1} parent=0 // pred_region
    _
  $region9: #{conv_block_pallas.1} parent=0 // pred_fallthru
    _
  // Predicated region
  $region10: #{conv_block_pallas.1} parent=0 // pred_check
    _
  $region11: #{conv_block_pallas.1} parent=0 // pred_check_branch
    %13 = sbr.rel (0) target = $region13
  $region12: #{conv_block_pallas.1} parent=0 // pred_region
    _
  $region13: #{conv_block_pallas.1} parent=0 // pred_fallthru
    _
  %v15 = vld [vmem:[%s2] sm:$0x1]
  %v16 = vld [vmem:[%s2 + $0x1] sm:$0x1]
  %v17 = vld [vmem:[%s0] sm:$0xf]
  %v18 = vld [vmem:[%s0 + $0x4] sm:$0xf]
  %v19 = vld [vmem:[%s1] sm:$0xf]
  %v20 = vld [vmem:[%s1 + $0x4] sm:$0xf]
  %v21 = vld [vmem:[%s1 + $0x8] sm:$0xf]
  %v22 = vld [vmem:[%s1 + $0xc] sm:$0xf]
  %v23 = vld [vmem:[%s1 + $0x10] sm:$0xf]
  %v24 = vld [vmem:[%s1 + $0x14] sm:$0xf]
  %v25 = vld [vmem:[%s1 + $0x18] sm:$0xf]
  %v26 = vld [vmem:[%s1 + $0x1c] sm:$0xf]
  %v27 = vld [vmem:[%s1 + $0x20] sm:$0xf]
  %v28 = vld [vmem:[%s0 + $0x8] sm:$0x1]
  %s29 = scalar_lea.vmem %s1, 36
  %v30 = vld [vmem:[%s29] sm:$0xf]
  %v31 = vld [vmem:[%s29 + $0x4] sm:$0xf]
  %v32 = vld [vmem:[%s29 + $0x8] sm:$0xf]
  %v33 = vld [vmem:[%s29 + $0xc] sm:$0xf]
  %v34 = vld [vmem:[%s29 + $0x10] sm:$0xf]
  %v35 = vld [vmem:[%s29 + $0x14] sm:$0xf]
  %v36 = vld [vmem:[%s29 + $0x18] sm:$0xf]
  %v37 = vld [vmem:[%s29 + $0x1c] sm:$0xf]
  %v38 = vld [vmem:[%s29 + $0x20] sm:$0xf]
  %v42 = vunpack.c.l.b16 %v17
  %v43 = vunpack.c.l.b16 %v18
  %v44 = vunpack.c.l.b16 %v28
  %v45 = vpack.c.b16 %v43, %v42
  %v46 = vpack.c.b16 %v44, %v44
  %vm47 = vsmask.f32 7424
  %v49 = vshrl.u32 %v45, 16
  %v51 = vshll.u32 %v45, 16
  %v53 = vrot.slane %v51, 1
  %v54 = vor.u32 %v49, %v53
  %v56 = vshll.u32 %v46, 16
  %v58 = vrot.slane %v56, 1
  %v59 = vsel %vm47, %v54, %v58
  %v69 = vunpack.c.l.b16 %v30
  %v70 = vunpack.c.l.b16 %v31
  %v71 = vunpack.c.l.b16 %v32
  %v72 = vunpack.c.l.b16 %v33
  %v73 = vunpack.c.l.b16 %v34
  %v74 = vunpack.c.l.b16 %v35
  %v75 = vunpack.c.l.b16 %v36
  %v76 = vunpack.c.l.b16 %v37
  %v77 = vunpack.c.l.b16 %v38
  %v78 = vpack.c.b16 %v70, %v69
  %v79 = vpack.c.b16 %v72, %v71
  %v80 = vpack.c.b16 %v74, %v73
  %v81 = vpack.c.b16 %v76, %v75
  %v82 = vpack.c.b16 %v77, %v77
  %vm87 = vcmask 588800
  %v89 = vsel %vm87, %v59, 0
  %vm91 = vcmask 1043456
  %v93 = vsel %vm91, %v82, 0
  %95 = vmatprep.subr.bf16.mxu0 0
  %96 = vmatpush1.bf16.msra.mxu0 %v78
  %97 = vmatprep.subr.bf16.mxu0 0
  %98 = vmatpush1.bf16.msra.mxu0 %v79
  %99 = vmatprep.subr.bf16.mxu0 0
  %100 = vmatpush1.bf16.msra.mxu0 %v80
  %101 = vmatprep.subr.bf16.mxu0 0
  %102 = vmatpush1.bf16.msra.mxu0 %v81
  %103 = vmatprep.subr.bf16.mxu0 0
  %104 = vmatpush1.bf16.msra.mxu0 %v93
  %105 = vmatprep.subr.bf16.mxu0 0
  %106 = vmatpush1.bf16.msra.mxu0 0
  %107 = vmatprep.subr.bf16.mxu0 0
  %108 = vmatpush1.bf16.msra.mxu0 0
  %109 = vmatprep.subr.bf16.mxu0 0
  %110 = vmatpush1.bf16.msra.mxu0 0
  %111 = vmatprep.subr.bf16.mxu0 0
  %112 = vmatpush1.bf16.msra.mxu0 0
  %113 = vmatprep.subr.bf16.mxu0 0
  %114 = vmatpush1.bf16.msra.mxu0 0
  %115 = vmatprep.subr.bf16.mxu0 0
  %116 = vmatpush1.bf16.msra.mxu0 0
  %117 = vmatprep.subr.bf16.mxu0 0
  %118 = vmatpush1.bf16.msra.mxu0 0
  %119 = vmatprep.subr.bf16.mxu0 0
  %120 = vmatpush1.bf16.msra.mxu0 0
  %121 = vmatprep.subr.bf16.mxu0 0
  %122 = vmatpush1.bf16.msra.mxu0 0
  %123 = vmatprep.subr.bf16.mxu0 0
  %124 = vmatpush1.bf16.msra.mxu0 0
  %125 = vmatprep.subr.bf16.mxu0 0
  %126 = vmatpush1.bf16.msra.mxu0 0
  %127 = vmatprep.mubr.bf16.mxu0 0
  %128 = vmatmul.mubr.bf16.gmra.mrb[0].mxu0 %v89
  %v129 = vpop.f32.mrb[0].mxu0
  %v130 = vadd.f32 0.0, %v129
  %v131 = vpop.f32.mrb[0].mxu0
  %v132 = vpop.f32.mrb[0].mxu0
  %v133 = vadd.f32 0.0, %v132
  %v134 = vpop.f32.mrb[0].mxu0
  %135 = vdwg.mxu0
  %v145 = vunpack.c.l.b16 %v19
  %v146 = vunpack.c.l.b16 %v20
  %v147 = vunpack.c.l.b16 %v21
  %v148 = vunpack.c.l.b16 %v22
  %v149 = vunpack.c.l.b16 %v23
  %v150 = vunpack.c.l.b16 %v24
  %v151 = vunpack.c.l.b16 %v25
  %v152 = vunpack.c.l.b16 %v26
  %v153 = vunpack.c.l.b16 %v27
  %v154 = vpack.c.b16 %v146, %v145
  %v155 = vpack.c.b16 %v148, %v147
  %v156 = vpack.c.b16 %v150, %v149
  %v157 = vpack.c.b16 %v152, %v151
  %v158 = vpack.c.b16 %v153, %v153
  %v163 = vsel %vm87, %v45, 0
  %v166 = vsel %vm91, %v158, 0
  %168 = vmatprep.subr.bf16.mxu0 0
  %169 = vmatpush1.bf16.msra.mxu0 %v154
  %170 = vmatprep.subr.bf16.mxu0 0
  %171 = vmatpush1.bf16.msra.mxu0 %v155
  %172 = vmatprep.subr.bf16.mxu0 0
  %173 = vmatpush1.bf16.msra.mxu0 %v156
  %174 = vmatprep.subr.bf16.mxu0 0
  %175 = vmatpush1.bf16.msra.mxu0 %v157
  %176 = vmatprep.subr.bf16.mxu0 0
  %177 = vmatpush1.bf16.msra.mxu0 %v166
  %178 = vmatprep.subr.bf16.mxu0 0
  %179 = vmatpush1.bf16.msra.mxu0 0
  %180 = vmatprep.subr.bf16.mxu0 0
  %181 = vmatpush1.bf16.msra.mxu0 0
  %182 = vmatprep.subr.bf16.mxu0 0
  %183 = vmatpush1.bf16.msra.mxu0 0
  %184 = vmatprep.subr.bf16.mxu0 0
  %185 = vmatpush1.bf16.msra.mxu0 0
  %186 = vmatprep.subr.bf16.mxu0 0
  %187 = vmatpush1.bf16.msra.mxu0 0
  %188 = vmatprep.subr.bf16.mxu0 0
  %189 = vmatpush1.bf16.msra.mxu0 0
  %190 = vmatprep.subr.bf16.mxu0 0
  %191 = vmatpush1.bf16.msra.mxu0 0
  %192 = vmatprep.subr.bf16.mxu0 0
  %193 = vmatpush1.bf16.msra.mxu0 0
  %194 = vmatprep.subr.bf16.mxu0 0
  %195 = vmatpush1.bf16.msra.mxu0 0
  %196 = vmatprep.subr.bf16.mxu0 0
  %197 = vmatpush1.bf16.msra.mxu0 0
  %198 = vmatprep.subr.bf16.mxu0 0
  %199 = vmatpush1.bf16.msra.mxu0 0
  %200 = vmatprep.mubr.bf16.mxu0 0
  %201 = vmatmul.mubr.bf16.gmra.mrb[0].mxu0 %v163
  %v202 = vpop.f32.mrb[0].mxu0
  %v203 = vadd.f32 %v130, %v202
  %v204 = vpop.f32.mrb[0].mxu0
  %v205 = vpop.f32.mrb[0].mxu0
  %v206 = vadd.f32 %v133, %v205
  %v207 = vpop.f32.mrb[0].mxu0
  %208 = vdwg.mxu0
  %v209 = vld [vmem:[%s0] sm:$0xe]
  %s210 = scalar_lea.vmem %s1, 72
  %v211 = vld [vmem:[%s210] sm:$0xf]
  %v212 = vld [vmem:[%s210 + $0x4] sm:$0xf]
  %v213 = vld [vmem:[%s210 + $0x8] sm:$0xf]
  %v214 = vld [vmem:[%s210 + $0xc] sm:$0xf]
  %v215 = vld [vmem:[%s210 + $0x10] sm:$0xf]
  %v216 = vld [vmem:[%s210 + $0x14] sm:$0xf]
  %v217 = vld [vmem:[%s210 + $0x18] sm:$0xf]
  %v218 = vld [vmem:[%s210 + $0x1c] sm:$0xf]
  %v219 = vld [vmem:[%s210 + $0x20] sm:$0xf]
  %v221 = vunpack.c.l.b16 %v209
  %v222 = vpack.c.b16 %v43, %v221
  %vm223 = vcmask 1046528
  %v224 = vrot.slane %v222, 1
  %v225 = vrot.slane %v46, 1
  %v226 = vsel %vm223, %v224, %v225
  %v236 = vunpack.c.l.b16 %v211
  %v237 = vunpack.c.l.b16 %v212
  %v238 = vunpack.c.l.b16 %v213
  %v239 = vunpack.c.l.b16 %v214
  %v240 = vunpack.c.l.b16 %v215
  %v241 = vunpack.c.l.b16 %v216
  %v242 = vunpack.c.l.b16 %v217
  %v243 = vunpack.c.l.b16 %v218
  %v244 = vunpack.c.l.b16 %v219
  %v245 = vpack.c.b16 %v237, %v236
  %v246 = vpack.c.b16 %v239, %v238
  %v247 = vpack.c.b16 %v241, %v240
  %v248 = vpack.c.b16 %v243, %v242
  %v249 = vpack.c.b16 %v244, %v244
  %v255 = vsel %vm87, %v226, 0
  %v258 = vsel %vm91, %v249, 0
  %260 = vmatprep.subr.bf16.mxu0 0
  %261 = vmatpush1.bf16.msra.mxu0 %v245
  %262 = vmatprep.subr.bf16.mxu0 0
  %263 = vmatpush1.bf16.msra.mxu0 %v246
  %264 = vmatprep.subr.bf16.mxu0 0
  %265 = vmatpush1.bf16.msra.mxu0 %v247
  %266 = vmatprep.subr.bf16.mxu0 0
  %267 = vmatpush1.bf16.msra.mxu0 %v248
  %268 = vmatprep.subr.bf16.mxu0 0
  %269 = vmatpush1.bf16.msra.mxu0 %v258
  %270 = vmatprep.subr.bf16.mxu0 0
  %271 = vmatpush1.bf16.msra.mxu0 0
  %272 = vmatprep.subr.bf16.mxu0 0
  %273 = vmatpush1.bf16.msra.mxu0 0
  %274 = vmatprep.subr.bf16.mxu0 0
  %275 = vmatpush1.bf16.msra.mxu0 0
  %276 = vmatprep.subr.bf16.mxu0 0
  %277 = vmatpush1.bf16.msra.mxu0 0
  %278 = vmatprep.subr.bf16.mxu0 0
  %279 = vmatpush1.bf16.msra.mxu0 0
  %280 = vmatprep.subr.bf16.mxu0 0
  %281 = vmatpush1.bf16.msra.mxu0 0
  %282 = vmatprep.subr.bf16.mxu0 0
  %283 = vmatpush1.bf16.msra.mxu0 0
  %284 = vmatprep.subr.bf16.mxu0 0
  %285 = vmatpush1.bf16.msra.mxu0 0
  %286 = vmatprep.subr.bf16.mxu0 0
  %287 = vmatpush1.bf16.msra.mxu0 0
  %288 = vmatprep.subr.bf16.mxu0 0
  %289 = vmatpush1.bf16.msra.mxu0 0
  %290 = vmatprep.subr.bf16.mxu0 0
  %291 = vmatpush1.bf16.msra.mxu0 0
  %292 = vmatprep.mubr.bf16.mxu0 0
  %293 = vmatmul.mubr.bf16.gmra.mrb[0].mxu0 %v255
  %v294 = vpop.f32.mrb[0].mxu0
  %v295 = vadd.f32 0.0, %v294
  %v296 = vpop.f32.mrb[0].mxu0
  %v297 = vpop.f32.mrb[0].mxu0
  %v298 = vadd.f32 0.0, %v297
  %v299 = vpop.f32.mrb[0].mxu0
  %300 = vdwg.mxu0
  %v301 = vadd.f32 %v203, %v295
  %v302 = vadd.f32 %v206, %v298
  %v303 = vlaneseq
  %v304 = vshrl.u32 %v303, 7
  %v305 = vsub.s32 0, %v304
  %v306 = vrot.slane %v15, %v305
  %v307 = vmul.f32 %v301, %v306
  %v308 = vmul.f32 %v302, %v306
  %v309 = vlaneseq
  %v310 = vshrl.u32 %v309, 7
  %v311 = vsub.s32 0, %v310
  %v312 = vrot.slane %v16, %v311
  %v313 = vadd.f32 %v307, %v312
  %v314 = vadd.f32 %v308, %v312
  %v315 = vmax.f32 %v313, 0.0
  %v316 = vmax.f32 %v314, 0.0
  %317 = vst [vmem:[%s3] sm:$0xff] %v315
  %318 = vst [vmem:[%s3 + $0x8] sm:$0xff] %v316
  %s319 = scalar_lea.vmem %s0, 12
  %v320 = vld [vmem:[%s319] sm:$0xf]
  %v321 = vld [vmem:[%s319 + $0x4] sm:$0xf]
  %v322 = vld [vmem:[%s1] sm:$0xf]
  %v323 = vld [vmem:[%s1 + $0x4] sm:$0xf]
  %v324 = vld [vmem:[%s1 + $0x8] sm:$0xf]
  %v325 = vld [vmem:[%s1 + $0xc] sm:$0xf]
  %v326 = vld [vmem:[%s1 + $0x10] sm:$0xf]
  %v327 = vld [vmem:[%s1 + $0x14] sm:$0xf]
  %v328 = vld [vmem:[%s1 + $0x18] sm:$0xf]
  %v329 = vld [vmem:[%s1 + $0x1c] sm:$0xf]
  %v330 = vld [vmem:[%s1 + $0x20] sm:$0xf]
  %v331 = vld [vmem:[%s319 + $0x8] sm:$0x1]
  %v332 = vld [vmem:[%s29] sm:$0xf]
  %v333 = vld [vmem:[%s29 + $0x4] sm:$0xf]
  %v334 = vld [vmem:[%s29 + $0x8] sm:$0xf]
  %v335 = vld [vmem:[%s29 + $0xc] sm:$0xf]
  %v336 = vld [vmem:[%s29 + $0x10] sm:$0xf]
  %v337 = vld [vmem:[%s29 + $0x14] sm:$0xf]
  %v338 = vld [vmem:[%s29 + $0x18] sm:$0xf]
  %v339 = vld [vmem:[%s29 + $0x1c] sm:$0xf]
  %v340 = vld [vmem:[%s29 + $0x20] sm:$0xf]
  %v344 = vunpack.c.l.b16 %v320
  %v345 = vunpack.c.l.b16 %v321
  %v346 = vunpack.c.l.b16 %v331
  %v347 = vpack.c.b16 %v345, %v344
  %v348 = vpack.c.b16 %v346, %v346
  %v350 = vshrl.u32 %v347, 16
  %v352 = vshll.u32 %v347, 16
  %v354 = vrot.slane %v352, 1
  %v355 = vor.u32 %v350, %v354
  %v357 = vshll.u32 %v348, 16
  %v359 = vrot.slane %v357, 1
  %v360 = vsel %vm47, %v355, %v359
  %v370 = vunpack.c.l.b16 %v332
  %v371 = vunpack.c.l.b16 %v333
  %v372 = vunpack.c.l.b16 %v334
  %v373 = vunpack.c.l.b16 %v335
  %v374 = vunpack.c.l.b16 %v336
  %v375 = vunpack.c.l.b16 %v337
  %v376 = vunpack.c.l.b16 %v338
  %v377 = vunpack.c.l.b16 %v339
  %v378 = vunpack.c.l.b16 %v340
  %v379 = vpack.c.b16 %v371, %v370
  %v380 = vpack.c.b16 %v373, %v372
  %v381 = vpack.c.b16 %v375, %v374
  %v382 = vpack.c.b16 %v377, %v376
  %v383 = vpack.c.b16 %v378, %v378
  %v389 = vsel %vm87, %v360, 0
  %v392 = vsel %vm91, %v383, 0
  %394 = vmatprep.subr.bf16.mxu0 0
  %395 = vmatpush1.bf16.msra.mxu0 %v379
  %396 = vmatprep.subr.bf16.mxu0 0
  %397 = vmatpush1.bf16.msra.mxu0 %v380
  %398 = vmatprep.subr.bf16.mxu0 0
  %399 = vmatpush1.bf16.msra.mxu0 %v381
  %400 = vmatprep.subr.bf16.mxu0 0
  %401 = vmatpush1.bf16.msra.mxu0 %v382
  %402 = vmatprep.subr.bf16.mxu0 0
  %403 = vmatpush1.bf16.msra.mxu0 %v392
  %404 = vmatprep.subr.bf16.mxu0 0
  %405 = vmatpush1.bf16.msra.mxu0 0
  %406 = vmatprep.subr.bf16.mxu0 0
  %407 = vmatpush1.bf16.msra.mxu0 0
  %408 = vmatprep.subr.bf16.mxu0 0
  %409 = vmatpush1.bf16.msra.mxu0 0
  %410 = vmatprep.subr.bf16.mxu0 0
  %411 = vmatpush1.bf16.msra.mxu0 0
  %412 = vmatprep.subr.bf16.mxu0 0
  %413 = vmatpush1.bf16.msra.mxu0 0
  %414 = vmatprep.subr.bf16.mxu0 0
  %415 = vmatpush1.bf16.msra.mxu0 0
  %416 = vmatprep.subr.bf16.mxu0 0
  %417 = vmatpush1.bf16.msra.mxu0 0
  %418 = vmatprep.subr.bf16.mxu0 0
  %419 = vmatpush1.bf16.msra.mxu0 0
  %420 = vmatprep.subr.bf16.mxu0 0
  %421 = vmatpush1.bf16.msra.mxu0 0
  %422 = vmatprep.subr.bf16.mxu0 0
  %423 = vmatpush1.bf16.msra.mxu0 0
  %424 = vmatprep.subr.bf16.mxu0 0
  %425 = vmatpush1.bf16.msra.mxu0 0
  %426 = vmatprep.mubr.bf16.mxu0 0
  %427 = vmatmul.mubr.bf16.gmra.mrb[0].mxu0 %v389
  %v428 = vpop.f32.mrb[0].mxu0
  %v429 = vadd.f32 0.0, %v428
  %v430 = vpop.f32.mrb[0].mxu0
  %v431 = vpop.f32.mrb[0].mxu0
  %v432 = vadd.f32 0.0, %v431
  %v433 = vpop.f32.mrb[0].mxu0
  %434 = vdwg.mxu0
  %v444 = vunpack.c.l.b16 %v322
  %v445 = vunpack.c.l.b16 %v323
  %v446 = vunpack.c.l.b16 %v324
  %v447 = vunpack.c.l.b16 %v325
  %v448 = vunpack.c.l.b16 %v326
  %v449 = vunpack.c.l.b16 %v327
  %v450 = vunpack.c.l.b16 %v328
  %v451 = vunpack.c.l.b16 %v329
  %v452 = vunpack.c.l.b16 %v330
  %v453 = vpack.c.b16 %v445, %v444
  %v454 = vpack.c.b16 %v447, %v446
  %v455 = vpack.c.b16 %v449, %v448
  %v456 = vpack.c.b16 %v451, %v450
  %v457 = vpack.c.b16 %v452, %v452
  %v462 = vsel %vm87, %v347, 0
  %v465 = vsel %vm91, %v457, 0
  %467 = vmatprep.subr.bf16.mxu0 0
  %468 = vmatpush1.bf16.msra.mxu0 %v453
  %469 = vmatprep.subr.bf16.mxu0 0
  %470 = vmatpush1.bf16.msra.mxu0 %v454
  %471 = vmatprep.subr.bf16.mxu0 0
  %472 = vmatpush1.bf16.msra.mxu0 %v455
  %473 = vmatprep.subr.bf16.mxu0 0
  %474 = vmatpush1.bf16.msra.mxu0 %v456
  %475 = vmatprep.subr.bf16.mxu0 0
  %476 = vmatpush1.bf16.msra.mxu0 %v465
  %477 = vmatprep.subr.bf16.mxu0 0
  %478 = vmatpush1.bf16.msra.mxu0 0
  %479 = vmatprep.subr.bf16.mxu0 0
  %480 = vmatpush1.bf16.msra.mxu0 0
  %481 = vmatprep.subr.bf16.mxu0 0
  %482 = vmatpush1.bf16.msra.mxu0 0
  %483 = vmatprep.subr.bf16.mxu0 0
  %484 = vmatpush1.bf16.msra.mxu0 0
  %485 = vmatprep.subr.bf16.mxu0 0
  %486 = vmatpush1.bf16.msra.mxu0 0
  %487 = vmatprep.subr.bf16.mxu0 0
  %488 = vmatpush1.bf16.msra.mxu0 0
  %489 = vmatprep.subr.bf16.mxu0 0
  %490 = vmatpush1.bf16.msra.mxu0 0
  %491 = vmatprep.subr.bf16.mxu0 0
  %492 = vmatpush1.bf16.msra.mxu0 0
  %493 = vmatprep.subr.bf16.mxu0 0
  %494 = vmatpush1.bf16.msra.mxu0 0
  %495 = vmatprep.subr.bf16.mxu0 0
  %496 = vmatpush1.bf16.msra.mxu0 0
  %497 = vmatprep.subr.bf16.mxu0 0
  %498 = vmatpush1.bf16.msra.mxu0 0
  %499 = vmatprep.mubr.bf16.mxu0 0
  %500 = vmatmul.mubr.bf16.gmra.mrb[0].mxu0 %v462
  %v501 = vpop.f32.mrb[0].mxu0
  %v502 = vadd.f32 %v429, %v501
  %v503 = vpop.f32.mrb[0].mxu0
  %v504 = vpop.f32.mrb[0].mxu0
  %v505 = vadd.f32 %v432, %v504
  %v506 = vpop.f32.mrb[0].mxu0
  %507 = vdwg.mxu0
  %v508 = vld [vmem:[%s319] sm:$0xe]
  %v509 = vld [vmem:[%s210] sm:$0xf]
  %v510 = vld [vmem:[%s210 + $0x4] sm:$0xf]
  %v511 = vld [vmem:[%s210 + $0x8] sm:$0xf]
  %v512 = vld [vmem:[%s210 + $0xc] sm:$0xf]
  %v513 = vld [vmem:[%s210 + $0x10] sm:$0xf]
  %v514 = vld [vmem:[%s210 + $0x14] sm:$0xf]
  %v515 = vld [vmem:[%s210 + $0x18] sm:$0xf]
  %v516 = vld [vmem:[%s210 + $0x1c] sm:$0xf]
  %v517 = vld [vmem:[%s210 + $0x20] sm:$0xf]
  %v519 = vunpack.c.l.b16 %v508
  %v520 = vpack.c.b16 %v345, %v519
  %v521 = vrot.slane %v520, 1
  %v522 = vrot.slane %v348, 1
  %v523 = vsel %vm223, %v521, %v522
  %v533 = vunpack.c.l.b16 %v509
  %v534 = vunpack.c.l.b16 %v510
  %v535 = vunpack.c.l.b16 %v511
  %v536 = vunpack.c.l.b16 %v512
  %v537 = vunpack.c.l.b16 %v513
  %v538 = vunpack.c.l.b16 %v514
  %v539 = vunpack.c.l.b16 %v515
  %v540 = vunpack.c.l.b16 %v516
  %v541 = vunpack.c.l.b16 %v517
  %v542 = vpack.c.b16 %v534, %v533
  %v543 = vpack.c.b16 %v536, %v535
  %v544 = vpack.c.b16 %v538, %v537
  %v545 = vpack.c.b16 %v540, %v539
  %v546 = vpack.c.b16 %v541, %v541
  %v552 = vsel %vm87, %v523, 0
  %v555 = vsel %vm91, %v546, 0
  %557 = vmatprep.subr.bf16.mxu0 0
  %558 = vmatpush1.bf16.msra.mxu0 %v542
  %559 = vmatprep.subr.bf16.mxu0 0
  %560 = vmatpush1.bf16.msra.mxu0 %v543
  %561 = vmatprep.subr.bf16.mxu0 0
  %562 = vmatpush1.bf16.msra.mxu0 %v544
  %563 = vmatprep.subr.bf16.mxu0 0
  %564 = vmatpush1.bf16.msra.mxu0 %v545
  %565 = vmatprep.subr.bf16.mxu0 0
  %566 = vmatpush1.bf16.msra.mxu0 %v555
  %567 = vmatprep.subr.bf16.mxu0 0
  %568 = vmatpush1.bf16.msra.mxu0 0
  %569 = vmatprep.subr.bf16.mxu0 0
  %570 = vmatpush1.bf16.msra.mxu0 0
  %571 = vmatprep.subr.bf16.mxu0 0
  %572 = vmatpush1.bf16.msra.mxu0 0
  %573 = vmatprep.subr.bf16.mxu0 0
  %574 = vmatpush1.bf16.msra.mxu0 0
  %575 = vmatprep.subr.bf16.mxu0 0
  %576 = vmatpush1.bf16.msra.mxu0 0
  %577 = vmatprep.subr.bf16.mxu0 0
  %578 = vmatpush1.bf16.msra.mxu0 0
  %579 = vmatprep.subr.bf16.mxu0 0
  %580 = vmatpush1.bf16.msra.mxu0 0
  %581 = vmatprep.subr.bf16.mxu0 0
  %582 = vmatpush1.bf16.msra.mxu0 0
  %583 = vmatprep.subr.bf16.mxu0 0
  %584 = vmatpush1.bf16.msra.mxu0 0
  %585 = vmatprep.subr.bf16.mxu0 0
  %586 = vmatpush1.bf16.msra.mxu0 0
  %587 = vmatprep.subr.bf16.mxu0 0
  %588 = vmatpush1.bf16.msra.mxu0 0
  %589 = vmatprep.mubr.bf16.mxu0 0
  %590 = vmatmul.mubr.bf16.gmra.mrb[0].mxu0 %v552
  %v591 = vpop.f32.mrb[0].mxu0
  %v592 = vadd.f32 0.0, %v591
  %v593 = vpop.f32.mrb[0].mxu0
  %v594 = vpop.f32.mrb[0].mxu0
  %v595 = vadd.f32 0.0, %v594
  %v596 = vpop.f32.mrb[0].mxu0
  %597 = vdwg.mxu0
  %v598 = vadd.f32 %v502, %v592
  %v599 = vadd.f32 %v505, %v595
  %v600 = vmul.f32 %v598, %v306
  %v601 = vmul.f32 %v599, %v306
  %v602 = vadd.f32 %v600, %v312
  %v603 = vadd.f32 %v601, %v312
  %v604 = vmax.f32 %v602, 0.0
  %v605 = vmax.f32 %v603, 0.0
  %s606 = scalar_lea.vmem %s3, 16
  %607 = vst [vmem:[%s606] sm:$0xff] %v604
  %608 = vst [vmem:[%s606 + $0x8] sm:$0xff] %v605
  // Predicated region
  $region14: #{conv_block_pallas.1} parent=0 // pred_check
    _
  $region15: #{conv_block_pallas.1} parent=0 // pred_check_branch
    %610 = sbr.rel (0) target = $region17
  $region16: #{conv_block_pallas.1} parent=0 // pred_region
    _
  $region17: #{conv_block_pallas.1} parent=0 // pred_fallthru
    _
  // Predicated region
  $region18: #{conv_block_pallas.1} parent=0 // pred_check
    _
  $region19: #{conv_block_pallas.1} parent=0 // pred_check_branch
    %612 = sbr.rel (0) target = $region21
  $region20: #{conv_block_pallas.1} parent=0 // pred_region
    _
  $region21: #{conv_block_pallas.1} parent=0 // pred_fallthru
    _

</llo_original>
